<compile_context>
chip_gen: v7x
topology: tpu7x:2x2x1
jax: 0.10.0
libtpu: 0.0.40
codegen_flags: <defaults>
</compile_context>

<pallas_src>
import jax
import jax.numpy as jnp
from jax.experimental import pallas as pl
from jax.experimental.pallas import tpu as pltpu

_LANE = 1024             # lane-dense last dim (multiple of 128 -> unmasked vst)
_MAX_BLOCK_ROWS = 1024   # (1024, 1024) f32 = 4 MiB / buffer, 16 MiB double-buffered
_VMEM_LIMIT = 32 * 1024 * 1024


def _linear_sigmoid_kernel(x_ref, w_ref, b_ref, o_ref):
    # x_ref: (block_rows, _LANE) VMEM tile; w_ref, b_ref: (1, 1) SMEM scalars.
    w = w_ref[0, 0]
    b = b_ref[0, 0]
    z = x_ref[...].astype(jnp.float32) * w + b                # Linear(1, 1)
    # Exact sigmoid: exp on the EUP + one add + one divide, all hidden under
    # the DMA of this HBM-bound kernel (dropped the approx reciprocal).
    o_ref[...] = (1.0 / (1.0 + jnp.exp(-z))).astype(o_ref.dtype)


def _sublane_multiple(dtype):
    # Minimal second-minor tile: 8 for 4-byte, 16 for 2-byte, 32 for 1-byte.
    return max(8, 32 // jnp.dtype(dtype).itemsize)


def _round_up(x, m):
    return ((x + m - 1) // m) * m


def _build_call(out_dtype, padded_rows, block_rows, grid, semantics):
    padded_n = padded_rows * _LANE
    itemsize = jnp.dtype(out_dtype).itemsize
    return pl.pallas_call(
        _linear_sigmoid_kernel,
        out_shape=jax.ShapeDtypeStruct((padded_rows, _LANE), out_dtype),
        grid=grid,
        in_specs=[
            # Lane-dense activation tile, double-buffered by the pipeline.
            # TODO(synk): if an xprof trace on v7x shows exposed input DMA,
            # add pipeline_mode=pl.Buffered(3) here (measure-gated).
            pl.BlockSpec((block_rows, _LANE), lambda i: (i, 0)),
            # Scalars stay resident in SMEM (constant block index -> no
            # per-step DMA of the scalars).
            pl.BlockSpec((1, 1), lambda i: (0, 0),
                         memory_space=pltpu.MemorySpace.SMEM),
            pl.BlockSpec((1, 1), lambda i: (0, 0),
                         memory_space=pltpu.MemorySpace.SMEM),
        ],
        out_specs=pl.BlockSpec((block_rows, _LANE), lambda i: (i, 0)),
        compiler_params=pltpu.CompilerParams(
            dimension_semantics=semantics,
            vmem_limit_bytes=_VMEM_LIMIT,
        ),
        cost_estimate=pl.CostEstimate(
            flops=2 * padded_n,
            transcendentals=padded_n,
            bytes_accessed=2 * padded_n * itemsize,
        ),
    )


def domain_classifier_forward(x, weight, bias):
    """x: (..., 1).  weight: (1, 1).  bias: (1,).  Returns sigmoid(x @ W.T + b)."""
    orig_shape = x.shape
    assert orig_shape[-1] == 1, "domain_Classifier expects in_features == 1"
    out_dtype = x.dtype
    n = x.size

    w2 = weight.reshape(1, 1).astype(jnp.float32)
    b2 = bias.reshape(1, 1).astype(jnp.float32)

    # ---- lane-dense slab; pad only up to the minimal (sublane, lane) granule ----
    sub = _sublane_multiple(x.dtype)          # 8 (f32) / 16 (bf16) / 32 (int8)
    rows = pl.cdiv(n, _LANE)
    padded_rows = _round_up(max(rows, 1), sub)
    padded_n = padded_rows * _LANE

    flat = x.reshape(-1)
    needs_pad = padded_n != n
    if needs_pad:
        # <= sub*_LANE - 1 elements of padding (32 KiB for f32); skipped
        # entirely when n is already aligned, so no extra HBM copies then.
        flat = jnp.pad(flat, (0, padded_n - n))
    slab = flat.reshape(padded_rows, _LANE)

    # ---- tile rows: big tiles for DMA efficiency, >=2 grid steps for v7x ----
    if padded_rows <= 2 * sub:
        block_rows = padded_rows                              # tiny input: 1 block
    else:
        block_rows = min(_MAX_BLOCK_ROWS,
                         _round_up(pl.cdiv(padded_rows, 2), sub))
    grid = (pl.cdiv(padded_rows, block_rows),)

    # CORE_PARALLEL engages both v7x TensorCores (plain "parallel" measurably
    # does not change codegen); fall back where it is rejected (v5e/v6e).
    semantics = (pltpu.CORE_PARALLEL,) if grid[0] >= 2 else ("parallel",)
    try:
        out = _build_call(out_dtype, padded_rows, block_rows, grid, semantics)(
            slab, w2, b2)
        out = jax.block_until_ready(out)
    except Exception:
        out = _build_call(out_dtype, padded_rows, block_rows, grid, ("parallel",))(
            slab, w2, b2)

    out_flat = out.reshape(-1)
    if needs_pad:
        out_flat = out_flat[:n]
    return out_flat.reshape(orig_shape)


def _reference_forward(x, weight, bias):
    return jax.nn.sigmoid(x @ weight.T + bias)


if __name__ == "__main__":
    key = jax.random.PRNGKey(0)
    k_x, k_w, k_b, k_x2, k_x3 = jax.random.split(key, 5)

    # Deterministic parameter init mimicking nn.Linear(1, 1):
    # uniform(-1/sqrt(fan_in), 1/sqrt(fan_in)) with fan_in = 1.
    weight = jax.random.uniform(k_w, (1, 1), jnp.float32, minval=-1.0, maxval=1.0)
    bias = jax.random.uniform(k_b, (1,), jnp.float32, minval=-1.0, maxval=1.0)

    # 1) Small batch of scalar features (matches the module's (N, 1) input).
    x = jax.random.normal(k_x, (8, 1), jnp.float32)
    out = jax.block_until_ready(domain_classifier_forward(x, weight, bias))
    ref = _reference_forward(x, weight, bias)
    assert out.shape == (8, 1)
    assert jnp.allclose(out, ref, atol=1e-6, rtol=1e-5)

    # 2) Non-lane-aligned batch exercises the (small) padding / slice-back path.
    x2 = jax.random.normal(k_x2, (2050, 1), jnp.float32)
    out2 = jax.block_until_ready(domain_classifier_forward(x2, weight, bias))
    ref2 = _reference_forward(x2, weight, bias)
    assert out2.shape == (2050, 1)
    assert jnp.allclose(out2, ref2, atol=1e-6, rtol=1e-5)

    # 3) Aligned, multi-block batch: no pad/slice, grid >= 2 (CORE_PARALLEL path).
    x3 = jax.random.normal(k_x3, (32 * 1024, 1), jnp.float32)
    out3 = jax.block_until_ready(domain_classifier_forward(x3, weight, bias))
    ref3 = _reference_forward(x3, weight, bias)
    assert out3.shape == (32 * 1024, 1)
    assert jnp.allclose(out3, ref3, atol=1e-6, rtol=1e-5)

    print("KERNEL_OK")
</pallas_src>

<mosaic_0001>
module attributes {stable_mosaic.version = 11 : i64} {
  func.func @_linear_sigmoid_kernel(%arg0: i32, %arg1: memref<8x1024xf32, #tpu.memory_space<vmem>>, %arg2: memref<1x1xf32, #tpu.memory_space<smem>>, %arg3: memref<1x1xf32, #tpu.memory_space<smem>>, %arg4: memref<8x1024xf32, #tpu.memory_space<vmem>>) attributes {dimension_semantics = [#tpu.dimension_semantics<parallel>], iteration_bounds = array<i64: 1>, scalar_prefetch = 0 : i64, scratch_operands = 0 : i64, tpu.core_type = #tpu.core_type<tc>, window_params = [{transform_indices = @transform_0, window_bounds = array<i64: 8, 1024>}, {transform_indices = @transform_1, window_bounds = array<i64: 1, 1>}, {transform_indices = @transform_2, window_bounds = array<i64: 1, 1>}, {transform_indices = @transform_3, window_bounds = array<i64: 8, 1024>}]} {
    %c0 = arith.constant 0 : index
    %c0_0 = arith.constant 0 : index
    %0 = memref.load %arg2[%c0, %c0_0] : memref<1x1xf32, #tpu.memory_space<smem>>
    %c0_1 = arith.constant 0 : index
    %c0_2 = arith.constant 0 : index
    %1 = memref.load %arg3[%c0_1, %c0_2] : memref<1x1xf32, #tpu.memory_space<smem>>
    %c0_3 = arith.constant 0 : index
    %c0_4 = arith.constant 0 : index
    %2 = vector.load %arg1[%c0_3, %c0_4] : memref<8x1024xf32, #tpu.memory_space<vmem>>, vector<8x1024xf32>
    %3 = vector.broadcast %0 : f32 to vector<8x1024xf32>
    %4 = arith.mulf %2, %3 : vector<8x1024xf32>
    %5 = vector.broadcast %1 : f32 to vector<8x1024xf32>
    %6 = arith.addf %4, %5 : vector<8x1024xf32>
    %cst = arith.constant 0.000000e+00 : f32
    %7 = vector.broadcast %cst : f32 to vector<8x1024xf32>
    %8 = arith.subf %7, %6 : vector<8x1024xf32>
    %9 = math.exp %8 : vector<8x1024xf32>
    %cst_5 = arith.constant 1.000000e+00 : f32
    %10 = vector.broadcast %cst_5 : f32 to vector<8x1024xf32>
    %11 = arith.addf %10, %9 : vector<8x1024xf32>
    %cst_6 = arith.constant 1.000000e+00 : f32
    %12 = vector.broadcast %cst_6 : f32 to vector<8x1024xf32>
    %13 = arith.divf %12, %11 : vector<8x1024xf32>
    %c0_7 = arith.constant 0 : index
    %c0_8 = arith.constant 0 : index
    %14 = vector.load %arg4[%c0_7, %c0_8] : memref<8x1024xf32, #tpu.memory_space<vmem>>, vector<8x1024xf32>
    tpu.vector_store %arg4[%c0_7, %c0_8], %13 {strides = array<i32>} : memref<8x1024xf32, #tpu.memory_space<vmem>>, vector<8x1024xf32>,
    return
  }
  func.func @transform_0(%arg0: i32) -> (i32, i32) {
    %c0_i32 = arith.constant 0 : i32
    %c0_i32_0 = arith.constant 0 : i32
    return %arg0, %c0_i32 : i32, i32
  }
  func.func @transform_1(%arg0: i32) -> (i32, i32) {
    %c0_i32 = arith.constant 0 : i32
    %c0_i32_0 = arith.constant 0 : i32
    %c0_i32_1 = arith.constant 0 : i32
    return %c0_i32, %c0_i32_0 : i32, i32
  }
  func.func @transform_2(%arg0: i32) -> (i32, i32) {
    %c0_i32 = arith.constant 0 : i32
    %c0_i32_0 = arith.constant 0 : i32
    %c0_i32_1 = arith.constant 0 : i32
    return %c0_i32, %c0_i32_0 : i32, i32
  }
  func.func @transform_3(%arg0: i32) -> (i32, i32) {
    %c0_i32 = arith.constant 0 : i32
    %c0_i32_0 = arith.constant 0 : i32
    return %arg0, %c0_i32 : i32, i32
  }
}

module attributes {stable_mosaic.version = 11 : i64} {
  func.func @_linear_sigmoid_kernel(%arg0: i32, %arg1: memref<8x1024xf32, #tpu.memory_space<vmem>>, %arg2: memref<1x1xf32, #tpu.memory_space<smem>>, %arg3: memref<1x1xf32, #tpu.memory_space<smem>>, %arg4: memref<8x1024xf32, #tpu.memory_space<vmem>>) attributes {dimension_semantics = [#tpu.dimension_semantics<parallel>], iteration_bounds = array<i64: 1>, scalar_prefetch = 0 : i64, scratch_operands = 0 : i64, tpu.core_type = #tpu.core_type<tc>, window_params = [{transform_indices = @transform_0, window_bounds = array<i64: 8, 1024>}, {transform_indices = @transform_1, window_bounds = array<i64: 1, 1>}, {transform_indices = @transform_2, window_bounds = array<i64: 1, 1>}, {transform_indices = @transform_3, window_bounds = array<i64: 8, 1024>}]} {
    %c0 = arith.constant 0 : index
    %c0_0 = arith.constant 0 : index
    %0 = memref.load %arg2[%c0, %c0_0] : memref<1x1xf32, #tpu.memory_space<smem>>
    %c0_1 = arith.constant 0 : index
    %c0_2 = arith.constant 0 : index
    %1 = memref.load %arg3[%c0_1, %c0_2] : memref<1x1xf32, #tpu.memory_space<smem>>
    %c0_3 = arith.constant 0 : index
    %c0_4 = arith.constant 0 : index
    %2 = vector.load %arg1[%c0_3, %c0_4] : memref<8x1024xf32, #tpu.memory_space<vmem>>, vector<8x1024xf32>
    %3 = vector.broadcast %0 : f32 to vector<8x1024xf32>
    %4 = arith.mulf %2, %3 : vector<8x1024xf32>
    %5 = vector.broadcast %1 : f32 to vector<8x1024xf32>
    %6 = arith.addf %4, %5 : vector<8x1024xf32>
    %cst = arith.constant 0.000000e+00 : f32
    %7 = vector.broadcast %cst : f32 to vector<8x1024xf32>
    %8 = arith.subf %7, %6 : vector<8x1024xf32>
    %9 = math.exp %8 : vector<8x1024xf32>
    %cst_5 = arith.constant 1.000000e+00 : f32
    %10 = vector.broadcast %cst_5 : f32 to vector<8x1024xf32>
    %11 = arith.addf %10, %9 : vector<8x1024xf32>
    %cst_6 = arith.constant 1.000000e+00 : f32
    %12 = vector.broadcast %cst_6 : f32 to vector<8x1024xf32>
    %13 = arith.divf %12, %11 : vector<8x1024xf32>
    %c0_7 = arith.constant 0 : index
    %c0_8 = arith.constant 0 : index
    %14 = vector.load %arg4[%c0_7, %c0_8] : memref<8x1024xf32, #tpu.memory_space<vmem>>, vector<8x1024xf32>
    tpu.vector_store %arg4[%c0_7, %c0_8], %13 {strides = array<i32>} : memref<8x1024xf32, #tpu.memory_space<vmem>>, vector<8x1024xf32>,
    return
  }
  func.func @transform_0(%arg0: i32) -> (i32, i32) {
    %c0_i32 = arith.constant 0 : i32
    %c0_i32_0 = arith.constant 0 : i32
    return %arg0, %c0_i32 : i32, i32
  }
  func.func @transform_1(%arg0: i32) -> (i32, i32) {
    %c0_i32 = arith.constant 0 : i32
    %c0_i32_0 = arith.constant 0 : i32
    %c0_i32_1 = arith.constant 0 : i32
    return %c0_i32, %c0_i32_0 : i32, i32
  }
  func.func @transform_2(%arg0: i32) -> (i32, i32) {
    %c0_i32 = arith.constant 0 : i32
    %c0_i32_0 = arith.constant 0 : i32
    %c0_i32_1 = arith.constant 0 : i32
    return %c0_i32, %c0_i32_0 : i32, i32
  }
  func.func @transform_3(%arg0: i32) -> (i32, i32) {
    %c0_i32 = arith.constant 0 : i32
    %c0_i32_0 = arith.constant 0 : i32
    return %arg0, %c0_i32 : i32, i32
  }
}

</mosaic_0001>

<llo_original>
// kernel: tpu_custom_call.1
$region0: #{tpu_custom_call.1}
  #allocation0 [shape = 'u32[]', space=smem, size = 0x4, offset = 0x4, fixed_abs, tag = 'smem constant byte address 0x4 - core index']
  #allocation1 [shape = 'u32[144,128]{1,0:T(1,128)}', space=vmem, size = 0x12000, scoped, tag = 'internal scratch']
  #allocation2 [shape = 'f32[1,1]{1,0:T(1,128)S(6)}', space=smem, size = 0x200, scoped, tag = 'scoped memory for tpu_custom_call.1']
  #allocation3 [shape = 'f32[1,1]{1,0:T(1,128)S(6)}', space=smem, size = 0x200, scoped, tag = 'scoped memory for tpu_custom_call.1']
  %s0 = inlined_call_operand.hbm [shape: f32[8,1024], index: 0, kind: input, shape index: {}]
  %s1 = inlined_call_operand.<no memory space> [shape: f32[1,1], index: 1, kind: input, shape index: {}]
  %s2 = inlined_call_operand.<no memory space> [shape: f32[1,1], index: 2, kind: input, shape index: {}]
  %s3 = inlined_call_operand.hbm [shape: f32[8,1024], index: 3, kind: output, shape index: {}]
  %s4 = sld [smem:[#allocation0]]
  $region26: #{tpu_custom_call.1} parent=0
    _
  %s6 = ssub.s32 1, %s4
  %s7 = scalar_select 0, %s6, %s4
  %8 = sst [smem:[#allocation2]] %s1
  %9 = sst [smem:[#allocation3]] %s2
  $region1: #{tpu_custom_call.1} parent=0
    #allocation4 [shape = 'u8[32768]{0}', space=vmem, size = 0x8000, scoped, tag = 'input window, operand 0, single buffered']
    #allocation5 [shape = 's32[1]{0}', space=sflag, size = 0x4, scoped, tag = 'scoped memory for tpu_custom_call.1']
    #allocation6 [shape = 's32[1]{0}', space=sflag, size = 0x4, scoped, tag = 'scoped memory for tpu_custom_call.1']
    #allocation7 [shape = 'u8[32768]{0}', space=vmem, size = 0x8000, scoped, tag = 'output window, operand 0, single buffered']
    %10 = vsyncpa [#allocation5], 0
    %11 = vsyncpa [#allocation6], 0
    // Predicated region
    $region2: #{tpu_custom_call.1} parent=1 // pred_check
      _
    $region3: #{tpu_custom_call.1} parent=1 // pred_check_branch
      %13 = sbr.rel (0) target = $region5
    $region4: #{tpu_custom_call.1} parent=1 // pred_region
      %s15 = ssub.s32 1024, 1024
      %16 = vsyncadd [#allocation5], %s15
      %s18 = sshll.u32 [#allocation4], 4
      %s19 = int_to_ptr.vmem [resolvable:$true] %s18
      %21 = dma.hbm_to_vmem [thread:$0]  %s0, 1024, %s19, [#allocation5]
    $region5: #{tpu_custom_call.1} parent=1 // pred_fallthru
      _
    // Predicated region
    $region6: #{tpu_custom_call.1} parent=1 // pred_check
      _
    $region7: #{tpu_custom_call.1} parent=1 // pred_check_branch
      %23 = sbr.rel (0) target = $region9
    $region8: #{tpu_custom_call.1} parent=1 // pred_region
      _
    $region9: #{tpu_custom_call.1} parent=1 // pred_fallthru
      _
    // Predicated region
    $region10: #{tpu_custom_call.1} parent=1 // pred_check
      _
    $region11: #{tpu_custom_call.1} parent=1 // pred_check_branch
      %25 = sbr.rel (0) target = $region13
    $region12: #{tpu_custom_call.1} parent=1 // pred_region
      _
    $region13: #{tpu_custom_call.1} parent=1 // pred_fallthru
      _
    // Predicated region
    $region14: #{tpu_custom_call.1} parent=1 // pred_check
      _
    $region15: #{tpu_custom_call.1} parent=1 // pred_check_branch
      %27 = sbr.rel (0) target = $region17
    $region16: #{tpu_custom_call.1} parent=1 // pred_region
      %28 = dma.done [#allocation5], 1024
    $region17: #{tpu_custom_call.1} parent=1 // pred_fallthru
      _
    %s29 = sld [smem:[#allocation2]]
    %s30 = sld [smem:[#allocation3]]
    %v31 = vld [vmem:[#allocation4] sm:$0xff]
    %v32 = vld [vmem:[#allocation4 + $0x8] sm:$0xff]
    %v33 = vld [vmem:[#allocation4 + $0x10] sm:$0xff]
    %v34 = vld [vmem:[#allocation4 + $0x18] sm:$0xff]
    %v35 = vld [vmem:[#allocation4 + $0x20] sm:$0xff]
    %v36 = vld [vmem:[#allocation4 + $0x28] sm:$0xff]
    %v37 = vld [vmem:[#allocation4 + $0x30] sm:$0xff]
    %v38 = vld [vmem:[#allocation4 + $0x38] sm:$0xff]
    %v39 = vstv %s29
    %v40 = vmul.f32 %v31, %v39
    %v41 = vmul.f32 %v32, %v39
    %v42 = vmul.f32 %v33, %v39
    %v43 = vmul.f32 %v34, %v39
    %v44 = vmul.f32 %v35, %v39
    %v45 = vmul.f32 %v36, %v39
    %v46 = vmul.f32 %v37, %v39
    %v47 = vmul.f32 %v38, %v39
    %v48 = vstv %s30
    %v49 = vadd.f32 %v40, %v48
    %v50 = vadd.f32 %v41, %v48
    %v51 = vadd.f32 %v42, %v48
    %v52 = vadd.f32 %v43, %v48
    %v53 = vadd.f32 %v44, %v48
    %v54 = vadd.f32 %v45, %v48
    %v55 = vadd.f32 %v46, %v48
    %v56 = vadd.f32 %v47, %v48
    %v57 = vsub.f32 0.0, %v49
    %v58 = vsub.f32 0.0, %v50
    %v59 = vsub.f32 0.0, %v51
    %v60 = vsub.f32 0.0, %v52
    %v61 = vsub.f32 0.0, %v53
    %v62 = vsub.f32 0.0, %v54
    %v63 = vsub.f32 0.0, %v55
    %v64 = vsub.f32 0.0, %v56
    %v65 = vmul.f32 %v57, 1.442695
    %v66 = vpow.pop %v65
    %v67 = vmul.f32 %v58, 1.442695
    %v68 = vpow.pop %v67
    %v69 = vmul.f32 %v59, 1.442695
    %v70 = vpow.pop %v69
    %v71 = vmul.f32 %v60, 1.442695
    %v72 = vpow.pop %v71
    %v73 = vmul.f32 %v61, 1.442695
    %v74 = vpow.pop %v73
    %v75 = vmul.f32 %v62, 1.442695
    %v76 = vpow.pop %v75
    %v77 = vmul.f32 %v63, 1.442695
    %v78 = vpow.pop %v77
    %v79 = vmul.f32 %v64, 1.442695
    %v80 = vpow.pop %v79
    %v81 = vadd.f32 %v66, 1.0
    %v82 = vadd.f32 %v68, 1.0
    %v83 = vadd.f32 %v70, 1.0
    %v84 = vadd.f32 %v72, 1.0
    %v85 = vadd.f32 %v74, 1.0
    %v86 = vadd.f32 %v76, 1.0
    %v87 = vadd.f32 %v78, 1.0
    %v88 = vadd.f32 %v80, 1.0
    %v89 = vrcp.pop %v81
    %v90 = vmul.f32 1.0, %v89
    %v91 = vrcp.pop %v82
    %v92 = vmul.f32 1.0, %v91
    %v93 = vrcp.pop %v83
    %v94 = vmul.f32 1.0, %v93
    %v95 = vrcp.pop %v84
    %v96 = vmul.f32 1.0, %v95
    %v97 = vrcp.pop %v85
    %v98 = vmul.f32 1.0, %v97
    %v99 = vrcp.pop %v86
    %v100 = vmul.f32 1.0, %v99
    %v101 = vrcp.pop %v87
    %v102 = vmul.f32 1.0, %v101
    %v103 = vrcp.pop %v88
    %v104 = vmul.f32 1.0, %v103
    %105 = vst [vmem:[#allocation7] sm:$0xff] %v90
    %106 = vst [vmem:[#allocation7 + $0x8] sm:$0xff] %v92
    %107 = vst [vmem:[#allocation7 + $0x10] sm:$0xff] %v94
    %108 = vst [vmem:[#allocation7 + $0x18] sm:$0xff] %v96
    %109 = vst [vmem:[#allocation7 + $0x20] sm:$0xff] %v98
    %110 = vst [vmem:[#allocation7 + $0x28] sm:$0xff] %v100
    %111 = vst [vmem:[#allocation7 + $0x30] sm:$0xff] %v102
    %112 = vst [vmem:[#allocation7 + $0x38] sm:$0xff] %v104
    // Predicated region
    $region18: #{tpu_custom_call.1} parent=1 // pred_check
      _
    $region19: #{tpu_custom_call.1} parent=1 // pred_check_branch
      %114 = sbr.rel (0) target = $region21
    $region20: #{tpu_custom_call.1} parent=1 // pred_region
      %s116 = ssub.s32 1024, 1024
      %117 = vsyncadd [#allocation6], %s116
      %s119 = sshll.u32 [#allocation7], 4
      %s120 = int_to_ptr.vmem [resolvable:$true] %s119
      %122 = dma.vmem_to_hbm [thread:$0]  %s120, 1024, %s3, [#allocation6]
    $region21: #{tpu_custom_call.1} parent=1 // pred_fallthru
      _
    // Predicated region
    $region22: #{tpu_custom_call.1} parent=1 // pred_check
      _
    $region23: #{tpu_custom_call.1} parent=1 // pred_check_branch
      %124 = sbr.rel (0) target = $region25
    $region24: #{tpu_custom_call.1} parent=1 // pred_region
      %125 = dma.done [#allocation6], 1024
    $region25: #{tpu_custom_call.1} parent=1 // pred_fallthru
      _
    %126 = vsyncpa [#allocation5], 1
    %127 = vsyncpa [#allocation6], 1

// kernel: tpu_custom_call.1
$region0: #{tpu_custom_call.1}
  #allocation0 [shape = 'u32[]', space=smem, size = 0x4, offset = 0x4, fixed_abs, tag = 'smem constant byte address 0x4 - core index']
  #allocation1 [shape = 'u32[144,128]{1,0:T(1,128)}', space=vmem, size = 0x12000, scoped, tag = 'internal scratch']
  #allocation2 [shape = 'f32[1,1]{1,0:T(1,128)S(6)}', space=smem, size = 0x200, scoped, tag = 'scoped memory for tpu_custom_call.1']
  #allocation3 [shape = 'f32[1,1]{1,0:T(1,128)S(6)}', space=smem, size = 0x200, scoped, tag = 'scoped memory for tpu_custom_call.1']
  %s0 = inlined_call_operand.hbm [shape: f32[8,1024], index: 0, kind: input, shape index: {}]
  %s1 = inlined_call_operand.<no memory space> [shape: f32[1,1], index: 1, kind: input, shape index: {}]
  %s2 = inlined_call_operand.<no memory space> [shape: f32[1,1], index: 2, kind: input, shape index: {}]
  %s3 = inlined_call_operand.hbm [shape: f32[8,1024], index: 3, kind: output, shape index: {}]
  %s4 = sld [smem:[#allocation0]]
  $region26: #{tpu_custom_call.1} parent=0
    _
  %s6 = ssub.s32 1, %s4
  %s7 = scalar_select 0, %s6, %s4
  %8 = sst [smem:[#allocation2]] %s1
  %9 = sst [smem:[#allocation3]] %s2
  $region1: #{tpu_custom_call.1} parent=0
    #allocation4 [shape = 'u8[32768]{0}', space=vmem, size = 0x8000, scoped, tag = 'input window, operand 0, single buffered']
    #allocation5 [shape = 's32[1]{0}', space=sflag, size = 0x4, scoped, tag = 'scoped memory for tpu_custom_call.1']
    #allocation6 [shape = 's32[1]{0}', space=sflag, size = 0x4, scoped, tag = 'scoped memory for tpu_custom_call.1']
    #allocation7 [shape = 'u8[32768]{0}', space=vmem, size = 0x8000, scoped, tag = 'output window, operand 0, single buffered']
    %10 = vsyncpa [#allocation5], 0
    %11 = vsyncpa [#allocation6], 0
    // Predicated region
    $region2: #{tpu_custom_call.1} parent=1 // pred_check
      _
    $region3: #{tpu_custom_call.1} parent=1 // pred_check_branch
      %13 = sbr.rel (0) target = $region5
    $region4: #{tpu_custom_call.1} parent=1 // pred_region
      %s15 = ssub.s32 1024, 1024
      %16 = vsyncadd [#allocation5], %s15
      %s18 = sshll.u32 [#allocation4], 4
      %s19 = int_to_ptr.vmem [resolvable:$true] %s18
      %21 = dma.hbm_to_vmem [thread:$0]  %s0, 1024, %s19, [#allocation5]
    $region5: #{tpu_custom_call.1} parent=1 // pred_fallthru
      _
    // Predicated region
    $region6: #{tpu_custom_call.1} parent=1 // pred_check
      _
    $region7: #{tpu_custom_call.1} parent=1 // pred_check_branch
      %23 = sbr.rel (0) target = $region9
    $region8: #{tpu_custom_call.1} parent=1 // pred_region
      _
    $region9: #{tpu_custom_call.1} parent=1 // pred_fallthru
      _
    // Predicated region
    $region10: #{tpu_custom_call.1} parent=1 // pred_check
      _
    $region11: #{tpu_custom_call.1} parent=1 // pred_check_branch
      %25 = sbr.rel (0) target = $region13
    $region12: #{tpu_custom_call.1} parent=1 // pred_region
      _
    $region13: #{tpu_custom_call.1} parent=1 // pred_fallthru
      _
    // Predicated region
    $region14: #{tpu_custom_call.1} parent=1 // pred_check
      _
    $region15: #{tpu_custom_call.1} parent=1 // pred_check_branch
      %27 = sbr.rel (0) target = $region17
    $region16: #{tpu_custom_call.1} parent=1 // pred_region
      %28 = dma.done [#allocation5], 1024
    $region17: #{tpu_custom_call.1} parent=1 // pred_fallthru
      _
    %s29 = sld [smem:[#allocation2]]
    %s30 = sld [smem:[#allocation3]]
    %v31 = vld [vmem:[#allocation4] sm:$0xff]
    %v32 = vld [vmem:[#allocation4 + $0x8] sm:$0xff]
    %v33 = vld [vmem:[#allocation4 + $0x10] sm:$0xff]
    %v34 = vld [vmem:[#allocation4 + $0x18] sm:$0xff]
    %v35 = vld [vmem:[#allocation4 + $0x20] sm:$0xff]
    %v36 = vld [vmem:[#allocation4 + $0x28] sm:$0xff]
    %v37 = vld [vmem:[#allocation4 + $0x30] sm:$0xff]
    %v38 = vld [vmem:[#allocation4 + $0x38] sm:$0xff]
    %v39 = vstv %s29
    %v40 = vmul.f32 %v31, %v39
    %v41 = vmul.f32 %v32, %v39
    %v42 = vmul.f32 %v33, %v39
    %v43 = vmul.f32 %v34, %v39
    %v44 = vmul.f32 %v35, %v39
    %v45 = vmul.f32 %v36, %v39
    %v46 = vmul.f32 %v37, %v39
    %v47 = vmul.f32 %v38, %v39
    %v48 = vstv %s30
    %v49 = vadd.f32 %v40, %v48
    %v50 = vadd.f32 %v41, %v48
    %v51 = vadd.f32 %v42, %v48
    %v52 = vadd.f32 %v43, %v48
    %v53 = vadd.f32 %v44, %v48
    %v54 = vadd.f32 %v45, %v48
    %v55 = vadd.f32 %v46, %v48
    %v56 = vadd.f32 %v47, %v48
    %v57 = vsub.f32 0.0, %v49
    %v58 = vsub.f32 0.0, %v50
    %v59 = vsub.f32 0.0, %v51
    %v60 = vsub.f32 0.0, %v52
    %v61 = vsub.f32 0.0, %v53
    %v62 = vsub.f32 0.0, %v54
    %v63 = vsub.f32 0.0, %v55
    %v64 = vsub.f32 0.0, %v56
    %v65 = vmul.f32 %v57, 1.442695
    %v66 = vpow.pop %v65
    %v67 = vmul.f32 %v58, 1.442695
    %v68 = vpow.pop %v67
    %v69 = vmul.f32 %v59, 1.442695
    %v70 = vpow.pop %v69
    %v71 = vmul.f32 %v60, 1.442695
    %v72 = vpow.pop %v71
    %v73 = vmul.f32 %v61, 1.442695
    %v74 = vpow.pop %v73
    %v75 = vmul.f32 %v62, 1.442695
    %v76 = vpow.pop %v75
    %v77 = vmul.f32 %v63, 1.442695
    %v78 = vpow.pop %v77
    %v79 = vmul.f32 %v64, 1.442695
    %v80 = vpow.pop %v79
    %v81 = vadd.f32 %v66, 1.0
    %v82 = vadd.f32 %v68, 1.0
    %v83 = vadd.f32 %v70, 1.0
    %v84 = vadd.f32 %v72, 1.0
    %v85 = vadd.f32 %v74, 1.0
    %v86 = vadd.f32 %v76, 1.0
    %v87 = vadd.f32 %v78, 1.0
    %v88 = vadd.f32 %v80, 1.0
    %v89 = vrcp.pop %v81
    %v90 = vmul.f32 1.0, %v89
    %v91 = vrcp.pop %v82
    %v92 = vmul.f32 1.0, %v91
    %v93 = vrcp.pop %v83
    %v94 = vmul.f32 1.0, %v93
    %v95 = vrcp.pop %v84
    %v96 = vmul.f32 1.0, %v95
    %v97 = vrcp.pop %v85
    %v98 = vmul.f32 1.0, %v97
    %v99 = vrcp.pop %v86
    %v100 = vmul.f32 1.0, %v99
    %v101 = vrcp.pop %v87
    %v102 = vmul.f32 1.0, %v101
    %v103 = vrcp.pop %v88
    %v104 = vmul.f32 1.0, %v103
    %105 = vst [vmem:[#allocation7] sm:$0xff] %v90
    %106 = vst [vmem:[#allocation7 + $0x8] sm:$0xff] %v92
    %107 = vst [vmem:[#allocation7 + $0x10] sm:$0xff] %v94
    %108 = vst [vmem:[#allocation7 + $0x18] sm:$0xff] %v96
    %109 = vst [vmem:[#allocation7 + $0x20] sm:$0xff] %v98
    %110 = vst [vmem:[#allocation7 + $0x28] sm:$0xff] %v100
    %111 = vst [vmem:[#allocation7 + $0x30] sm:$0xff] %v102
    %112 = vst [vmem:[#allocation7 + $0x38] sm:$0xff] %v104
    // Predicated region
    $region18: #{tpu_custom_call.1} parent=1 // pred_check
      _
    $region19: #{tpu_custom_call.1} parent=1 // pred_check_branch
      %114 = sbr.rel (0) target = $region21
    $region20: #{tpu_custom_call.1} parent=1 // pred_region
      %s116 = ssub.s32 1024, 1024
      %117 = vsyncadd [#allocation6], %s116
      %s119 = sshll.u32 [#allocation7], 4
      %s120 = int_to_ptr.vmem [resolvable:$true] %s119
      %122 = dma.vmem_to_hbm [thread:$0]  %s120, 1024, %s3, [#allocation6]
    $region21: #{tpu_custom_call.1} parent=1 // pred_fallthru
      _
    // Predicated region
    $region22: #{tpu_custom_call.1} parent=1 // pred_check
      _
    $region23: #{tpu_custom_call.1} parent=1 // pred_check_branch
      %124 = sbr.rel (0) target = $region25
    $region24: #{tpu_custom_call.1} parent=1 // pred_region
      %125 = dma.done [#allocation6], 1024
    $region25: #{tpu_custom_call.1} parent=1 // pred_fallthru
      _
    %126 = vsyncpa [#allocation5], 1
    %127 = vsyncpa [#allocation6], 1

</llo_original>
